<compile_context>
chip_gen: v5e
topology: v5e:2x2
jax: 0.10.0
libtpu: 0.0.40
codegen_flags: <defaults>
</compile_context>

<pallas_src>
import jax
import jax.numpy as jnp
from jax.experimental import pallas as pl
from jax.experimental.pallas import tpu as pltpu

_DEFAULT_LANE_TILE = 8192     # multiple of 256; 8*8192*4B = 256 KiB/tile (x2 buffers)
_NUM_CORE_SLICES = 2          # leading "parallel" grid axis -> both TCs on v7x
_SMALL_N_THRESHOLD = 1024     # below this a fused XLA reduction is faster


def _ray_moment_kernel(p_ref, m_ref):
    """Accumulates the (8, 8) moment matrix M over lane-tiles of rays.

    p_ref: (8, TN) packed rays: rows 0-2 = origin, rows 3-5 = direction,
           row 6 = weight, row 7 = zero padding.  Padded lanes have w=0 and
           d=0, hence exactly zero contribution.
    m_ref: (1, 8, 8) resident accumulator (same block for every inner step):
      M[0:3, 0:3] = S  = sum_i w_i d̂_i d̂_iᵀ
      M[0:3, 7]   = u  = sum_i w_i d̂_i (d̂_i · o_i)
      M[3,   3:6] = t  = sum_i w_i o_i
      M[3,   6]   = sw = sum_i w_i
    """
    i = pl.program_id(1)

    @pl.when(i == 0)
    def _():
        m_ref[...] = jnp.zeros_like(m_ref)

    p = p_ref[...]                                      # (8, TN)
    o = p[0:3, :]                                       # (3, TN)
    d = p[3:6, :]                                       # (3, TN)
    w = p[6:7, :]                                       # (1, TN)

    # Normalize directions (safe for zero-padded rays: d=0 -> dn=0).
    nsq = jnp.sum(d * d, axis=0, keepdims=True)         # (1, TN)
    dn = d * jax.lax.rsqrt(jnp.maximum(nsq, 1e-12))     # unit directions
    wd = w * dn                                         # (3, TN)
    ddo = jnp.sum(dn * o, axis=0, keepdims=True)        # (1, TN)  d̂_i · o_i

    # One NT matmul produces S, u, t and sw in a single (8, 8) result.
    lhs = jnp.concatenate([wd, w, jnp.zeros_like(p[0:4, :])], axis=0)   # (8, TN)
    rhs = jnp.concatenate([dn, o, jnp.ones_like(w), ddo], axis=0)       # (8, TN)

    m_ref[0] += jax.lax.dot_general(
        lhs, rhs, (((1,), (1,)), ((), ())),
        preferred_element_type=jnp.float32)


def _weighted_line_intersection_jnp(rays_ori, rays_dir, weights):
    """Fused-XLA reference / small-N fast path."""
    o = rays_ori.astype(jnp.float32)
    d = rays_dir.astype(jnp.float32)
    w = weights.astype(jnp.float32)[:, None]
    dn = d * jax.lax.rsqrt(jnp.maximum(jnp.sum(d * d, -1, keepdims=True), 1e-12))
    sw = jnp.sum(w)
    S = (w * dn).T @ dn
    t = jnp.sum(w * o, axis=0)
    u = jnp.sum((w * dn) * jnp.sum(dn * o, -1, keepdims=True), axis=0)
    A = sw * jnp.eye(3, dtype=jnp.float32) - S
    b = t - u
    return jnp.linalg.solve(A, b)


def weighted_line_intersection(rays_ori, rays_dir, weights, *,
                               lane_tile=_DEFAULT_LANE_TILE,
                               force_pallas=False):
    """compute_line_intersection_impl2: weighted LSQ nearest point to rays."""
    n = rays_ori.shape[0]
    if n < _SMALL_N_THRESHOLD and not force_pallas:
        return _weighted_line_intersection_jnp(rays_ori, rays_dir, weights)

    o = rays_ori.astype(jnp.float32)
    d = rays_dir.astype(jnp.float32)
    w = weights.astype(jnp.float32)

    # Single packed (8, N) stream: one dense, (8,128)-aligned DMA per tile.
    # TODO(synk): producing rays already in this (8, N) layout upstream would
    # remove this extra packing/transpose HBM pass entirely (biggest win on v5e).
    packed = jnp.concatenate(
        [o.T, d.T, w[None, :], jnp.zeros((1, n), jnp.float32)], axis=0)

    per_slice = pl.cdiv(n, _NUM_CORE_SLICES)
    tile = max(256, min(int(lane_tile), pl.cdiv(per_slice, 256) * 256))
    chunk = _NUM_CORE_SLICES * tile
    n_pad = pl.cdiv(n, chunk) * chunk
    tiles_per_slice = n_pad // chunk
    packed = jnp.pad(packed, ((0, 0), (0, n_pad - n)))

    m_parts = pl.pallas_call(
        _ray_moment_kernel,
        out_shape=jax.ShapeDtypeStruct((_NUM_CORE_SLICES, 8, 8), jnp.float32),
        grid=(_NUM_CORE_SLICES, tiles_per_slice),
        in_specs=[pl.BlockSpec((8, tile),
                               lambda c, i: (0, c * tiles_per_slice + i))],
        out_specs=pl.BlockSpec((1, 8, 8), lambda c, i: (c, 0, 0)),
        compiler_params=pltpu.CompilerParams(
            dimension_semantics=("parallel", "arbitrary")),
    )(packed)

    M = jnp.sum(m_parts, axis=0)                         # (8, 8)
    S = M[0:3, 0:3]
    u = M[0:3, 7]
    t = M[3, 3:6]
    sw = M[3, 6]
    A = sw * jnp.eye(3, dtype=jnp.float32) - S
    b = t - u
    # Note: a singular A (all-zero weights / parallel rays) yields NaN, matching
    # a plain linear solve in the reference implementation.
    return jnp.linalg.solve(A, b)                        # (3,)


def least_squared_loss(pred_score, camera_pose, camera_intrinsic, rays_ori,
                       rays_dir, total_number_of_features, backbone_wh,
                       obs_img_shape=(800, 800), *, force_pallas=False,
                       lane_tile=_DEFAULT_LANE_TILE):
    """JAX port of LeastSquaredLoss.forward (returns (avg_score, zeros))."""
    # gt_camera_position = [0,0,0,1] @ camera_pose[:3,:].T  -> (1, 3)
    gt_camera_position = (
        jnp.array([[0.0, 0.0, 0.0, 1.0]], dtype=camera_pose.dtype)
        @ camera_pose[:3, :].T)

    # TODO(synk): the torch.no_grad diagnostic block (best_one_to_one_rays_selector,
    # pred_gt_solution, prints) relies on helpers not defined in the reference
    # module and does not affect the returned loss — omitted.

    weights = pred_score / jnp.float32(total_number_of_features)
    solution = weighted_line_intersection(
        rays_ori, -rays_dir, weights,
        lane_tile=lane_tile, force_pallas=force_pallas)   # (3,)

    # smooth_l1_loss(solution[None], gt_camera_position), beta=1.0, mean.
    diff = solution[None] - gt_camera_position
    adiff = jnp.abs(diff)
    per_elem = jnp.where(adiff < 1.0, 0.5 * diff * diff, adiff - 0.5)
    avg_score = jnp.mean(per_elem)

    return avg_score, jnp.zeros_like(rays_ori[..., 0])


if __name__ == "__main__":
    key = jax.random.PRNGKey(0)
    k1, k2, k3 = jax.random.split(key, 3)

    n_rays = 4096
    total_number_of_features = n_rays
    backbone_wh = (64, 64)

    # Camera pose: identity rotation, translation t (so gt position == t).
    cam_t = jnp.array([1.5, -0.7, 2.0], dtype=jnp.float32)
    camera_pose = jnp.eye(4, dtype=jnp.float32).at[:3, 3].set(cam_t)
    camera_intrinsic = jnp.array(
        [[400.0, 0.0, 400.0],
         [0.0, 400.0, 400.0],
         [0.0, 0.0, 1.0]], dtype=jnp.float32)

    # Rays roughly pointing away from the camera position (so -dir points back).
    rays_ori = jax.random.normal(k1, (n_rays, 3), dtype=jnp.float32) * 2.0
    to_cam = cam_t[None, :] - rays_ori
    noise = 0.05 * jax.random.normal(k2, (n_rays, 3), dtype=jnp.float32)
    rays_dir = -(to_cam + noise)          # forward negates it again
    pred_score = jax.nn.softplus(
        jax.random.normal(k3, (n_rays,), dtype=jnp.float32))

    # Pallas path; lane_tile=1024 -> grid (2, 2): exercises both the core-split
    # axis and multi-step accumulation.
    avg_score, zeros = least_squared_loss(
        pred_score, camera_pose, camera_intrinsic, rays_ori, rays_dir,
        total_number_of_features, backbone_wh,
        force_pallas=True, lane_tile=1024)
    jax.block_until_ready((avg_score, zeros))

    # Cross-check the Pallas reduction against the fused-XLA reference path.
    weights = pred_score / jnp.float32(total_number_of_features)
    sol_pallas = weighted_line_intersection(
        rays_ori, -rays_dir, weights, lane_tile=1024, force_pallas=True)
    sol_ref = _weighted_line_intersection_jnp(rays_ori, -rays_dir, weights)
    jax.block_until_ready((sol_pallas, sol_ref))

    assert zeros.shape == (n_rays,)
    assert avg_score.shape == ()
    assert bool(jnp.all(jnp.isfinite(sol_pallas)))
    assert bool(jnp.allclose(sol_pallas, sol_ref, rtol=1e-3, atol=1e-3)), (
        sol_pallas, sol_ref)
    print("KERNEL_OK")
</pallas_src>

<mosaic_0001>
module attributes {stable_mosaic.version = 11 : i64} {
  func.func @_ray_moment_kernel(%arg0: i32, %arg1: i32, %arg2: memref<8x1024xf32, #tpu.memory_space<vmem>>, %arg3: memref<1x8x8xf32, #tpu.memory_space<vmem>>) attributes {dimension_semantics = [#tpu.dimension_semantics<parallel>, #tpu.dimension_semantics<arbitrary>], iteration_bounds = array<i64: 2, 2>, scalar_prefetch = 0 : i64, scratch_operands = 0 : i64, tpu.core_type = #tpu.core_type<tc>, window_params = [{transform_indices = @transform_0, window_bounds = array<i64: 8, 1024>}, {transform_indices = @transform_1, window_bounds = array<i64: 1, 8, 8>}]} {
    %c0_i32 = arith.constant 0 : i32
    %0 = arith.cmpi eq, %arg1, %c0_i32 : i32
    %1 = arith.extui %0 : i1 to i32
    %c0_i32_0 = arith.constant 0 : i32
    %2 = arith.cmpi ne, %1, %c0_i32_0 : i32
    scf.if %2 {
      %cst_13 = arith.constant 0.000000e+00 : f32
      %31 = vector.broadcast %cst_13 : f32 to vector<1x8x8xf32>
      %c0_14 = arith.constant 0 : index
      %c0_15 = arith.constant 0 : index
      %c0_16 = arith.constant 0 : index
      %32 = vector.load %arg3[%c0_14, %c0_15, %c0_16] : memref<1x8x8xf32, #tpu.memory_space<vmem>>, vector<1x8x8xf32>
      tpu.vector_store %arg3[%c0_14, %c0_15, %c0_16], %31 {strides = array<i32>} : memref<1x8x8xf32, #tpu.memory_space<vmem>>, vector<1x8x8xf32>,
    } else {
    }
    %c0 = arith.constant 0 : index
    %c0_1 = arith.constant 0 : index
    %3 = vector.load %arg2[%c0, %c0_1] : memref<8x1024xf32, #tpu.memory_space<vmem>>, vector<8x1024xf32>
    %4 = vector.extract_strided_slice %3 {offsets = [0, 0], sizes = [3, 1024], strides = [1, 1]} : vector<8x1024xf32> to vector<3x1024xf32>
    %5 = vector.extract_strided_slice %3 {offsets = [3, 0], sizes = [3, 1024], strides = [1, 1]} : vector<8x1024xf32> to vector<3x1024xf32>
    %6 = vector.extract_strided_slice %3 {offsets = [6, 0], sizes = [1, 1024], strides = [1, 1]} : vector<8x1024xf32> to vector<1x1024xf32>
    %7 = arith.mulf %5, %5 : vector<3x1024xf32>
    %cst = arith.constant dense<0.000000e+00> : vector<1024xf32>
    %8 = vector.multi_reduction <add>, %7, %cst [0] : vector<3x1024xf32> to vector<1024xf32>
    %9 = vector.shape_cast %8 : vector<1024xf32> to vector<1x1024xf32>
    %cst_2 = arith.constant 9.99999996E-13 : f32
    %10 = vector.broadcast %cst_2 : f32 to vector<1x1024xf32>
    %11 = arith.maximumf %9, %10 : vector<1x1024xf32>
    %12 = math.rsqrt %11 : vector<1x1024xf32>
    %13 = vector.broadcast %12 : vector<1x1024xf32> to vector<3x1024xf32>
    %14 = arith.mulf %5, %13 : vector<3x1024xf32>
    %15 = vector.broadcast %6 : vector<1x1024xf32> to vector<3x1024xf32>
    %16 = arith.mulf %15, %14 : vector<3x1024xf32>
    %17 = arith.mulf %14, %4 : vector<3x1024xf32>
    %cst_3 = arith.constant dense<0.000000e+00> : vector<1024xf32>
    %18 = vector.multi_reduction <add>, %17, %cst_3 [0] : vector<3x1024xf32> to vector<1024xf32>
    %19 = vector.shape_cast %18 : vector<1024xf32> to vector<1x1024xf32>
    %cst_4 = arith.constant 0.000000e+00 : f32
    %20 = vector.broadcast %cst_4 : f32 to vector<4x1024xf32>
    %21 = tpu.concatenate %16, %6, %20 in 0 : vector<3x1024xf32>, vector<1x1024xf32>, vector<4x1024xf32> -> vector<8x1024xf32>
    %cst_5 = arith.constant 1.000000e+00 : f32
    %22 = vector.broadcast %cst_5 : f32 to vector<1x1024xf32>
    %23 = tpu.concatenate %14, %4, %22, %19 in 0 : vector<3x1024xf32>, vector<3x1024xf32>, vector<1x1024xf32>, vector<1x1024xf32> -> vector<8x1024xf32>
    %c0_6 = arith.constant 0 : index
    %c0_7 = arith.constant 0 : index
    %c0_8 = arith.constant 0 : index
    %24 = vector.load %arg3[%c0_6, %c0_7, %c0_8] : memref<1x8x8xf32, #tpu.memory_space<vmem>>, vector<1x8x8xf32>
    %25 = vector.shape_cast %24 : vector<1x8x8xf32> to vector<8x8xf32>
    %cst_9 = arith.constant dense<0.000000e+00> : vector<8x8xf32>
    %26 = tpu.matmul %21, %23, %cst_9 {dimension_numbers = #tpu.dot_dimension_numbers<[1], [1], [0], [0], [0, 0, 1, 0], [], []>} : vector<8x1024xf32>, vector<8x1024xf32>, vector<8x8xf32> -> vector<8x8xf32>
    %27 = arith.addf %25, %26 : vector<8x8xf32>
    %c0_10 = arith.constant 0 : index
    %c0_11 = arith.constant 0 : index
    %c0_12 = arith.constant 0 : index
    %28 = vector.load %arg3[%c0_10, %c0_11, %c0_12] : memref<1x8x8xf32, #tpu.memory_space<vmem>>, vector<1x8x8xf32>
    %29 = vector.shape_cast %28 : vector<1x8x8xf32> to vector<8x8xf32>
    %30 = vector.shape_cast %27 : vector<8x8xf32> to vector<1x8x8xf32>
    tpu.vector_store %arg3[%c0_10, %c0_11, %c0_12], %30 {strides = array<i32>} : memref<1x8x8xf32, #tpu.memory_space<vmem>>, vector<1x8x8xf32>,
    return
  }
  func.func @transform_0(%arg0: i32, %arg1: i32) -> (i32, i32) {
    %c2_i32 = arith.constant 2 : i32
    %0 = arith.muli %arg0, %c2_i32 : i32
    %1 = arith.addi %0, %arg1 : i32
    %c0_i32 = arith.constant 0 : i32
    %c0_i32_0 = arith.constant 0 : i32
    return %c0_i32, %1 : i32, i32
  }
  func.func @transform_1(%arg0: i32, %arg1: i32) -> (i32, i32, i32) {
    %c0_i32 = arith.constant 0 : i32
    %c0_i32_0 = arith.constant 0 : i32
    %c0_i32_1 = arith.constant 0 : i32
    return %arg0, %c0_i32, %c0_i32_0 : i32, i32, i32
  }
}

</mosaic_0001>

<llo_original>
// kernel: tpu_custom_call.1
$region0: #{tpu_custom_call.1}
  #allocation0 [shape = 'u32[]', space=smem, size = 0x4, offset = 0x4, fixed_abs, tag = 'smem constant byte address 0x4 - core index']
  #allocation1 [shape = 'u32[72,128]{1,0:T(1,128)}', space=vmem, size = 0x9000, scoped, tag = 'internal scratch']
  %s0 = inlined_call_operand.hbm [shape: f32[8,4096], index: 0, kind: input, shape index: {}]
  %s1 = inlined_call_operand.hbm [shape: f32[2,8,8], index: 1, kind: output, shape index: {}]
  %s2 = sld [smem:[#allocation0]]
  $region45: #{tpu_custom_call.1} parent=0
    _
  %s4 = ssub.s32 1, %s2
  %s5 = scalar_select 0, %s4, %s2
  $region1: #{tpu_custom_call.1} parent=0
    #allocation2 [shape = 'u8[65536]{0}', space=vmem, size = 0x10000, scoped, tag = 'input window, operand 0']
    #allocation3 [shape = 's32[2]{0}', space=sflag, size = 0x8, scoped, tag = 'scoped memory for tpu_custom_call.1']
    #allocation4 [shape = 's32[2]{0}', space=sflag, size = 0x8, scoped, tag = 'scoped memory for tpu_custom_call.1']
    #allocation5 [shape = 'u8[8192]{0}', space=vmem, size = 0x2000, scoped, tag = 'output window, operand 0']
    %6 = vsyncpa [#allocation3], 0
    %s7 = scalar_lea.sflag [#allocation3], 1
    %8 = vsyncpa %s7, 0
    %9 = vsyncpa [#allocation4], 0
    %s10 = scalar_lea.sflag [#allocation4], 1
    %11 = vsyncpa %s10, 0
    loop: start=0, step=1, limit=6
    $region2: #{tpu_custom_call.1} parent=1 // loop_pre_header
      _
    $region3: #{tpu_custom_call.1} parent=1 // loop_header
      %s13 = sphi 0, %s17
      %p14 = scmp.ge.s32.totalorder %s13, 6
      %s20 = sphi 0, %s32
      %s21 = sphi 0, %s28
      %s22 = sphi 0, %s20
      %s23 = sphi 0, %s21
      %s24 = sphi 0, %s22
      %s25 = sphi 0, %s23
      %s39 = sphi 0, %s41
      %s42 = sphi 0, %s39
      %s43 = sphi 0, %s42
      %s59 = sphi 0, %s43
      %s65 = sphi 0, %s67
      %s68 = sphi 0, %s65
      %s69 = sphi 0, %s68
      %s85 = sphi 0, %s69
    $region4: #{tpu_custom_call.1} parent=1 // loop_header_branch
      %16 = sbr.rel (%p14) target = $region8
    $region5: #{tpu_custom_call.1} parent=1 // loop_body
      %s18 = ssub.s32 %s13, 1
      %s19 = ssub.s32 %s13, 2
      %s26 = sadd.s32 1, %s21
      %p27 = scmp.ge.s32.totalorder %s26, 2
      %s28 = scalar_select %p27, 0, %s26
      %s29 = sadd.s32 1, %s20
      %s30 = scalar_select %p27, %s29, %s20
      %p31 = scmp.ge.s32.totalorder %s30, 2
      %s32 = scalar_select %p31, 0, %s30
      %s33 = smul.u32 %s20, 2
      %s34 = sadd.s32 %s33, %s21
      %s35 = smul.u32 %s32, 2
      %s36 = sadd.s32 %s35, %s28
      %s37 = ssub.s32 %s34, %s36
      %p38 = scmp.eq.s32.totalorder %s37, 0
      %s40 = sadd.s32 %s39, 1
      %s41 = scalar_select %p38, %s39, %s40
      %p44 = pneg %p38
      %p45 = scmp.eq.s32.totalorder %s13, 3
      %p46 = por %p44, %p45
      %p47 = scmp.ne.s32.totalorder %s39, %s42
      %p48 = scmp.eq.s32.totalorder %s13, 0
      %p49 = por %p47, %p48
      %p50 = scmp.ne.s32.totalorder %s39, %s42
      %p51 = scmp.eq.s32.totalorder %s18, 3
      %p52 = por %p50, %p51
      %p53 = scmp.ne.s32.totalorder %s42, %s43
      %p54 = scmp.eq.s32.totalorder %s18, 0
      %p55 = por %p53, %p54
      %p56 = scmp.ne.s32.totalorder %s42, %s43
      %p57 = scmp.eq.s32.totalorder %s19, 3
      %p58 = por %p56, %p57
      %p60 = scmp.ne.s32.totalorder %s43, %s59
      %p61 = scmp.eq.s32.totalorder %s19, 0
      %p62 = por %p60, %p61
      %s63 = ssub.s32 %s20, %s32
      %p64 = scmp.eq.s32.totalorder %s63, 0
      %s66 = sadd.s32 %s65, 1
      %s67 = scalar_select %p64, %s65, %s66
      %p70 = pneg %p64
      %p71 = scmp.eq.s32.totalorder %s13, 3
      %p72 = por %p70, %p71
      %p73 = scmp.ne.s32.totalorder %s65, %s68
      %p74 = scmp.eq.s32.totalorder %s13, 0
      %p75 = por %p73, %p74
      %p76 = scmp.ne.s32.totalorder %s65, %s68
      %p77 = scmp.eq.s32.totalorder %s18, 3
      %p78 = por %p76, %p77
      %p79 = scmp.ne.s32.totalorder %s68, %s69
      %p80 = scmp.eq.s32.totalorder %s18, 0
      %p81 = por %p79, %p80
      %p82 = scmp.ne.s32.totalorder %s68, %s69
      %p83 = scmp.eq.s32.totalorder %s19, 3
      %p84 = por %p82, %p83
      %p86 = scmp.ne.s32.totalorder %s69, %s85
      %p87 = scmp.eq.s32.totalorder %s19, 0
      %p88 = por %p86, %p87
      %p89 = scmp.le.s32.totalorder 1, %s13
      %p90 = scmp.lt.s32.totalorder %s13, 5
      %p91 = pnand %p89, %p90
      %p92 = pneg %p91
      // Predicated region
      $region9: #{tpu_custom_call.1} parent=5 // pred_check
        _
      $region10: #{tpu_custom_call.1} parent=5 // pred_check_branch
        %94 = sbr.rel (%p91) target = $region12
      $region11: #{tpu_custom_call.1} parent=5 // pred_region
        %s95 = ssub.s32 %s13, 1
      $region12: #{tpu_custom_call.1} parent=5 // pred_fallthru
        _
      %p96 = scmp.lt.s32.totalorder %s13, 4
      // Predicated region
      $region13: #{tpu_custom_call.1} parent=5 // pred_check
        %p97 = pneg %p96
      $region14: #{tpu_custom_call.1} parent=5 // pred_check_branch
        %99 = sbr.rel (%p97) target = $region16
      $region15: #{tpu_custom_call.1} parent=5 // pred_region
        // Predicated region
        $region17: #{tpu_custom_call.1} parent=15 // pred_check
          %p100 = pneg %p49
        $region18: #{tpu_custom_call.1} parent=15 // pred_check_branch
          %102 = sbr.rel (%p100) target = $region20
        $region19: #{tpu_custom_call.1} parent=15 // pred_region
          %s103 = sand.u32 %s39, 1
          %s104 = scalar_lea.sflag [#allocation3], %s103
          %s105 = sand.u32 %s39, 1
          %s106 = smul.addr %s105, 64
          %s107 = scalar_lea.vmem [#allocation2], %s106
          %s108 = smul.u32 %s20, 2
          %s109 = sadd.s32 %s108, %s21
          %s110 = smul.u32 8, %s109
          %112 = vsyncadd %s104, 0
          %s113 = smul.addr %s110, 8
          %s114 = scalar_lea.hbm %s0, %s113
          %s116 = sshll.u32 %s114, 4
          %s117 = int_to_ptr.hbm [resolvable:$true] %s116
          %s118 = sshll.u32 %s107, 4
          %s119 = int_to_ptr.vmem [resolvable:$true] %s118
          %121 = dma.hbm_to_vmem [thread:$0]  %s117, 1024, %s119, %s104
        $region20: #{tpu_custom_call.1} parent=15 // pred_fallthru
          _
      $region16: #{tpu_custom_call.1} parent=5 // pred_fallthru
        _
      %p122 = scmp.le.s32.totalorder 1, %s13
      %p123 = scmp.lt.s32.totalorder %s13, 5
      %p124 = pnand %p122, %p123
      %p125 = pneg %p124
      // Predicated region
      $region21: #{tpu_custom_call.1} parent=5 // pred_check
        _
      $region22: #{tpu_custom_call.1} parent=5 // pred_check_branch
        %127 = sbr.rel (%p124) target = $region24
      $region23: #{tpu_custom_call.1} parent=5 // pred_region
        %s128 = ssub.s32 %s13, 1
        %s129 = sand.u32 %s42, 1
        %s130 = scalar_lea.sflag [#allocation3], %s129
        %s131 = sand.u32 %s42, 1
        %s132 = smul.addr %s131, 64
        %s133 = scalar_lea.vmem [#allocation2], %s132
        // Predicated region
        $region25: #{tpu_custom_call.1} parent=23 // pred_check
          %p134 = pneg %p55
        $region26: #{tpu_custom_call.1} parent=23 // pred_check_branch
          %136 = sbr.rel (%p134) target = $region28
        $region27: #{tpu_custom_call.1} parent=23 // pred_region
          %138 = dma.done %s130, 1024
        $region28: #{tpu_custom_call.1} parent=23 // pred_fallthru
          _
        %s139 = sand.u32 %s42, 1
        %s140 = scalar_lea.sflag [#allocation3], %s139
        %s141 = sand.u32 %s42, 1
        %s142 = smul.addr %s141, 64
        %s143 = scalar_lea.vmem [#allocation2], %s142
        %p144 = pneg %p55
        %p145 = pneg %p52
        %p146 = pneg %p81
        %p147 = pneg %p78
        %s148 = sand.u32 %s68, 1
        %s149 = scalar_lea.sflag [#allocation4], %s148
        %s150 = sand.u32 %s68, 1
        %s151 = smul.addr %s150, 8
        %s152 = scalar_lea.vmem [#allocation5], %s151
        %s153 = smul.u32 %s22, 2
        %s154 = sadd.s32 %s153, %s23
        %s155 = smul.u32 8, %s154
        %p156 = scmp.eq.s32.totalorder %s23, 0
        // Predicated region
        $region29: #{tpu_custom_call.1} parent=23 // pred_check
          %p157 = pneg %p156
        $region30: #{tpu_custom_call.1} parent=23 // pred_check_branch
          %159 = sbr.rel (%p157) target = $region32
        $region31: #{tpu_custom_call.1} parent=23 // pred_region
          %vm160 = vcmask 64512
          %161 = vst.msk [vmem:[%s152] sm:$0xff] %vm160, 0.0
        $region32: #{tpu_custom_call.1} parent=23 // pred_fallthru
          _
        %v162 = vld [vmem:[%s133] sm:$0xff]
        %v163 = vld [vmem:[%s133 + $0x8] sm:$0xff]
        %v164 = vld [vmem:[%s133 + $0x10] sm:$0xff]
        %v165 = vld [vmem:[%s133 + $0x18] sm:$0xff]
        %v166 = vld [vmem:[%s133 + $0x20] sm:$0xff]
        %v167 = vld [vmem:[%s133 + $0x28] sm:$0xff]
        %v168 = vld [vmem:[%s133 + $0x30] sm:$0xff]
        %v169 = vld [vmem:[%s133 + $0x38] sm:$0xff]
        %v170 = vmul.f32 %v162, %v162
        %v171 = vmul.f32 %v163, %v163
        %v172 = vmul.f32 %v164, %v164
        %v173 = vmul.f32 %v165, %v165
        %v174 = vmul.f32 %v166, %v166
        %v175 = vmul.f32 %v167, %v167
        %v176 = vmul.f32 %v168, %v168
        %v177 = vmul.f32 %v169, %v169
        %v186 = vrot.slane %v170, 3
        %v187 = vrot.slane %v171, 3
        %v188 = vrot.slane %v172, 3
        %v189 = vrot.slane %v173, 3
        %v190 = vrot.slane %v174, 3
        %v191 = vrot.slane %v175, 3
        %v192 = vrot.slane %v176, 3
        %v193 = vrot.slane %v177, 3
        %vm202 = vcmask 1042432
        %v203 = vsel %vm202, %v186, 0.0
        %v204 = vrot.slane %v203, 4
        %v205 = vadd.f32 %v203, %v204
        %v206 = vrot.slane %v205, 2
        %v207 = vadd.f32 %v205, %v206
        %v208 = vrot.slane %v207, 1
        %v209 = vadd.f32 %v207, %v208
        %v210 = vsel %vm202, %v187, 0.0
        %v211 = vrot.slane %v210, 4
        %v212 = vadd.f32 %v210, %v211
        %v213 = vrot.slane %v212, 2
        %v214 = vadd.f32 %v212, %v213
        %v215 = vrot.slane %v214, 1
        %v216 = vadd.f32 %v214, %v215
        %v217 = vsel %vm202, %v188, 0.0
        %v218 = vrot.slane %v217, 4
        %v219 = vadd.f32 %v217, %v218
        %v220 = vrot.slane %v219, 2
        %v221 = vadd.f32 %v219, %v220
        %v222 = vrot.slane %v221, 1
        %v223 = vadd.f32 %v221, %v222
        %v224 = vsel %vm202, %v189, 0.0
        %v225 = vrot.slane %v224, 4
        %v226 = vadd.f32 %v224, %v225
        %v227 = vrot.slane %v226, 2
        %v228 = vadd.f32 %v226, %v227
        %v229 = vrot.slane %v228, 1
        %v230 = vadd.f32 %v228, %v229
        %v231 = vsel %vm202, %v190, 0.0
        %v232 = vrot.slane %v231, 4
        %v233 = vadd.f32 %v231, %v232
        %v234 = vrot.slane %v233, 2
        %v235 = vadd.f32 %v233, %v234
        %v236 = vrot.slane %v235, 1
        %v237 = vadd.f32 %v235, %v236
        %v238 = vsel %vm202, %v191, 0.0
        %v239 = vrot.slane %v238, 4
        %v240 = vadd.f32 %v238, %v239
        %v241 = vrot.slane %v240, 2
        %v242 = vadd.f32 %v240, %v241
        %v243 = vrot.slane %v242, 1
        %v244 = vadd.f32 %v242, %v243
        %v245 = vsel %vm202, %v192, 0.0
        %v246 = vrot.slane %v245, 4
        %v247 = vadd.f32 %v245, %v246
        %v248 = vrot.slane %v247, 2
        %v249 = vadd.f32 %v247, %v248
        %v250 = vrot.slane %v249, 1
        %v251 = vadd.f32 %v249, %v250
        %v252 = vsel %vm202, %v193, 0.0
        %v253 = vrot.slane %v252, 4
        %v254 = vadd.f32 %v252, %v253
        %v255 = vrot.slane %v254, 2
        %v256 = vadd.f32 %v254, %v255
        %v257 = vrot.slane %v256, 1
        %v258 = vadd.f32 %v256, %v257
        %v259 = vmax.f32 %v209, 1e-12
        %v260 = vmax.f32 %v216, 1e-12
        %v261 = vmax.f32 %v223, 1e-12
        %v262 = vmax.f32 %v230, 1e-12
        %v263 = vmax.f32 %v237, 1e-12
        %v264 = vmax.f32 %v244, 1e-12
        %v265 = vmax.f32 %v251, 1e-12
        %v266 = vmax.f32 %v258, 1e-12
        %v267 = vrsqrt.pop %v259
        %v268 = vmul.f32 %v267, %v259
        %v269 = vmul.f32 %v268, %v267
        %v270 = vmul.f32 0.5, %v269
        %v271 = vsub.f32 1.5, %v270
        %v272 = vmul.f32 %v267, %v271
        %vm273 = vweird.f32 %v259
        %vm274 = vweird.f32 %v267
        %vm275 = vmor %vm273, %vm274
        %v276 = vsel %vm275, %v267, %v272
        %v277 = vrsqrt.pop %v260
        %v278 = vmul.f32 %v277, %v260
        %v279 = vmul.f32 %v278, %v277
        %v280 = vmul.f32 0.5, %v279
        %v281 = vsub.f32 1.5, %v280
        %v282 = vmul.f32 %v277, %v281
        %vm283 = vweird.f32 %v260
        %vm284 = vweird.f32 %v277
        %vm285 = vmor %vm283, %vm284
        %v286 = vsel %vm285, %v277, %v282
        %v287 = vrsqrt.pop %v261
        %v288 = vmul.f32 %v287, %v261
        %v289 = vmul.f32 %v288, %v287
        %v290 = vmul.f32 0.5, %v289
        %v291 = vsub.f32 1.5, %v290
        %v292 = vmul.f32 %v287, %v291
        %vm293 = vweird.f32 %v261
        %vm294 = vweird.f32 %v287
        %vm295 = vmor %vm293, %vm294
        %v296 = vsel %vm295, %v287, %v292
        %v297 = vrsqrt.pop %v262
        %v298 = vmul.f32 %v297, %v262
        %v299 = vmul.f32 %v298, %v297
        %v300 = vmul.f32 0.5, %v299
        %v301 = vsub.f32 1.5, %v300
        %v302 = vmul.f32 %v297, %v301
        %vm303 = vweird.f32 %v262
        %vm304 = vweird.f32 %v297
        %vm305 = vmor %vm303, %vm304
        %v306 = vsel %vm305, %v297, %v302
        %v307 = vrsqrt.pop %v263
        %v308 = vmul.f32 %v307, %v263
        %v309 = vmul.f32 %v308, %v307
        %v310 = vmul.f32 0.5, %v309
        %v311 = vsub.f32 1.5, %v310
        %v312 = vmul.f32 %v307, %v311
        %vm313 = vweird.f32 %v263
        %vm314 = vweird.f32 %v307
        %vm315 = vmor %vm313, %vm314
        %v316 = vsel %vm315, %v307, %v312
        %v317 = vrsqrt.pop %v264
        %v318 = vmul.f32 %v317, %v264
        %v319 = vmul.f32 %v318, %v317
        %v320 = vmul.f32 0.5, %v319
        %v321 = vsub.f32 1.5, %v320
        %v322 = vmul.f32 %v317, %v321
        %vm323 = vweird.f32 %v264
        %vm324 = vweird.f32 %v317
        %vm325 = vmor %vm323, %vm324
        %v326 = vsel %vm325, %v317, %v322
        %v327 = vrsqrt.pop %v265
        %v328 = vmul.f32 %v327, %v265
        %v329 = vmul.f32 %v328, %v327
        %v330 = vmul.f32 0.5, %v329
        %v331 = vsub.f32 1.5, %v330
        %v332 = vmul.f32 %v327, %v331
        %vm333 = vweird.f32 %v265
        %vm334 = vweird.f32 %v327
        %vm335 = vmor %vm333, %vm334
        %v336 = vsel %vm335, %v327, %v332
        %v337 = vrsqrt.pop %v266
        %v338 = vmul.f32 %v337, %v266
        %v339 = vmul.f32 %v338, %v337
        %v340 = vmul.f32 0.5, %v339
        %v341 = vsub.f32 1.5, %v340
        %v342 = vmul.f32 %v337, %v341
        %vm343 = vweird.f32 %v266
        %vm344 = vweird.f32 %v337
        %vm345 = vmor %vm343, %vm344
        %v346 = vsel %vm345, %v337, %v342
        %v347 = vmul.f32 %v162, %v276
        %v348 = vmul.f32 %v163, %v286
        %v349 = vmul.f32 %v164, %v296
        %v350 = vmul.f32 %v165, %v306
        %v351 = vmul.f32 %v166, %v316
        %v352 = vmul.f32 %v167, %v326
        %v353 = vmul.f32 %v168, %v336
        %v354 = vmul.f32 %v169, %v346
        %v355 = vperm.slane %v162, 6
        %v356 = vperm.slane %v163, 6
        %v357 = vperm.slane %v164, 6
        %v358 = vperm.slane %v165, 6
        %v359 = vperm.slane %v166, 6
        %v360 = vperm.slane %v167, 6
        %v361 = vperm.slane %v168, 6
        %v362 = vperm.slane %v169, 6
        %v363 = vmul.f32 %v355, %v347
        %v364 = vmul.f32 %v356, %v348
        %v365 = vmul.f32 %v357, %v349
        %v366 = vmul.f32 %v358, %v350
        %v367 = vmul.f32 %v359, %v351
        %v368 = vmul.f32 %v360, %v352
        %v369 = vmul.f32 %v361, %v353
        %v370 = vmul.f32 %v362, %v354
        %v379 = vrot.slane %v162, 5
        %v380 = vrot.slane %v163, 5
        %v381 = vrot.slane %v164, 5
        %v382 = vrot.slane %v165, 5
        %v383 = vrot.slane %v166, 5
        %v384 = vrot.slane %v167, 5
        %v385 = vrot.slane %v168, 5
        %v386 = vrot.slane %v169, 5
        %v395 = vmul.f32 %v347, %v379
        %v396 = vmul.f32 %v348, %v380
        %v397 = vmul.f32 %v349, %v381
        %v398 = vmul.f32 %v350, %v382
        %v399 = vmul.f32 %v351, %v383
        %v400 = vmul.f32 %v352, %v384
        %v401 = vmul.f32 %v353, %v385
        %v402 = vmul.f32 %v354, %v386
        %v411 = vrot.slane %v395, 3
        %v412 = vrot.slane %v396, 3
        %v413 = vrot.slane %v397, 3
        %v414 = vrot.slane %v398, 3
        %v415 = vrot.slane %v399, 3
        %v416 = vrot.slane %v400, 3
        %v417 = vrot.slane %v401, 3
        %v418 = vrot.slane %v402, 3
        %v427 = vsel %vm202, %v411, 0.0
        %v428 = vrot.slane %v427, 4
        %v429 = vadd.f32 %v427, %v428
        %v430 = vrot.slane %v429, 2
        %v431 = vadd.f32 %v429, %v430
        %v432 = vrot.slane %v431, 1
        %v433 = vadd.f32 %v431, %v432
        %v434 = vsel %vm202, %v412, 0.0
        %v435 = vrot.slane %v434, 4
        %v436 = vadd.f32 %v434, %v435
        %v437 = vrot.slane %v436, 2
        %v438 = vadd.f32 %v436, %v437
        %v439 = vrot.slane %v438, 1
        %v440 = vadd.f32 %v438, %v439
        %v441 = vsel %vm202, %v413, 0.0
        %v442 = vrot.slane %v441, 4
        %v443 = vadd.f32 %v441, %v442
        %v444 = vrot.slane %v443, 2
        %v445 = vadd.f32 %v443, %v444
        %v446 = vrot.slane %v445, 1
        %v447 = vadd.f32 %v445, %v446
        %v448 = vsel %vm202, %v414, 0.0
        %v449 = vrot.slane %v448, 4
        %v450 = vadd.f32 %v448, %v449
        %v451 = vrot.slane %v450, 2
        %v452 = vadd.f32 %v450, %v451
        %v453 = vrot.slane %v452, 1
        %v454 = vadd.f32 %v452, %v453
        %v455 = vsel %vm202, %v415, 0.0
        %v456 = vrot.slane %v455, 4
        %v457 = vadd.f32 %v455, %v456
        %v458 = vrot.slane %v457, 2
        %v459 = vadd.f32 %v457, %v458
        %v460 = vrot.slane %v459, 1
        %v461 = vadd.f32 %v459, %v460
        %v462 = vsel %vm202, %v416, 0.0
        %v463 = vrot.slane %v462, 4
        %v464 = vadd.f32 %v462, %v463
        %v465 = vrot.slane %v464, 2
        %v466 = vadd.f32 %v464, %v465
        %v467 = vrot.slane %v466, 1
        %v468 = vadd.f32 %v466, %v467
        %v469 = vsel %vm202, %v417, 0.0
        %v470 = vrot.slane %v469, 4
        %v471 = vadd.f32 %v469, %v470
        %v472 = vrot.slane %v471, 2
        %v473 = vadd.f32 %v471, %v472
        %v474 = vrot.slane %v473, 1
        %v475 = vadd.f32 %v473, %v474
        %v476 = vsel %vm202, %v418, 0.0
        %v477 = vrot.slane %v476, 4
        %v478 = vadd.f32 %v476, %v477
        %v479 = vrot.slane %v478, 2
        %v480 = vadd.f32 %v478, %v479
        %v481 = vrot.slane %v480, 1
        %v482 = vadd.f32 %v480, %v481
        %v491 = vrot.slane %v363, 3
        %v492 = vrot.slane %v364, 3
        %v493 = vrot.slane %v365, 3
        %v494 = vrot.slane %v366, 3
        %v495 = vrot.slane %v367, 3
        %v496 = vrot.slane %v368, 3
        %v497 = vrot.slane %v369, 3
        %v498 = vrot.slane %v370, 3
        %v507 = vrot.slane %v162, 3
        %v508 = vrot.slane %v163, 3
        %v509 = vrot.slane %v164, 3
        %v510 = vrot.slane %v165, 3
        %v511 = vrot.slane %v166, 3
        %v512 = vrot.slane %v167, 3
        %v513 = vrot.slane %v168, 3
        %v514 = vrot.slane %v169, 3
        %v523 = vsel %vm202, %v491, %v507
        %v524 = vsel %vm202, %v492, %v508
        %v525 = vsel %vm202, %v493, %v509
        %v526 = vsel %vm202, %v494, %v510
        %v527 = vsel %vm202, %v495, %v511
        %v528 = vsel %vm202, %v496, %v512
        %v529 = vsel %vm202, %v497, %v513
        %v530 = vsel %vm202, %v498, %v514
        %vm531 = vcmask 1043456
        %v532 = vsel %vm531, %v523, 0.0
        %v533 = vsel %vm531, %v524, 0.0
        %v534 = vsel %vm531, %v525, 0.0
        %v535 = vsel %vm531, %v526, 0.0
        %v536 = vsel %vm531, %v527, 0.0
        %v537 = vsel %vm531, %v528, 0.0
        %v538 = vsel %vm531, %v529, 0.0
        %v539 = vsel %vm531, %v530, 0.0
        %v548 = vrot.slane %v347, 3
        %v549 = vrot.slane %v348, 3
        %v550 = vrot.slane %v349, 3
        %v551 = vrot.slane %v350, 3
        %v552 = vrot.slane %v351, 3
        %v553 = vrot.slane %v352, 3
        %v554 = vrot.slane %v353, 3
        %v555 = vrot.slane %v354, 3
        %v564 = vsel %vm202, %v548, %v379
        %v565 = vsel %vm202, %v549, %v380
        %v566 = vsel %vm202, %v550, %v381
        %v567 = vsel %vm202, %v551, %v382
        %v568 = vsel %vm202, %v552, %v383
        %v569 = vsel %vm202, %v553, %v384
        %v570 = vsel %vm202, %v554, %v385
        %v571 = vsel %vm202, %v555, %v386
        %vm572 = vcmask 1045504
        %v573 = vsel %vm572, %v564, 1.0
        %v574 = vsel %vm572, %v565, 1.0
        %v575 = vsel %vm572, %v566, 1.0
        %v576 = vsel %vm572, %v567, 1.0
        %v577 = vsel %vm572, %v568, 1.0
        %v578 = vsel %vm572, %v569, 1.0
        %v579 = vsel %vm572, %v570, 1.0
        %v580 = vsel %vm572, %v571, 1.0
        %vm581 = vcmask 1046528
        %v582 = vsel %vm581, %v573, %v433
        %v583 = vsel %vm581, %v574, %v440
        %v584 = vsel %vm581, %v575, %v447
        %v585 = vsel %vm581, %v576, %v454
        %v586 = vsel %vm581, %v577, %v461
        %v587 = vsel %vm581, %v578, %v468
        %v588 = vsel %vm581, %v579, %v475
        %v589 = vsel %vm581, %v580, %v482
        %v590 = vld [vmem:[%s152] sm:$0xff]
        %591 = vmatpush.xpose.msra.mxu0 0.0
        %592 = vmatpush.xpose.msra.mxu0 0.0
        %593 = vmatpush.xpose.msra.mxu0 0.0
        %594 = vmatpush.xpose.msra.mxu0 0.0
        %595 = vmatpush.xpose.msra.mxu0 0.0
        %596 = vmatpush.xpose.msra.mxu0 0.0
        %597 = vmatpush.xpose.msra.mxu0 0.0
        %598 = vmatpush.xpose.msra.mxu0 0.0
        %599 = vmatpush.xpose.msra.mxu0 0.0
        %600 = vmatpush.xpose.msra.mxu0 0.0
        %601 = vmatpush.xpose.msra.mxu0 0.0
        %602 = vmatpush.xpose.msra.mxu0 0.0
        %603 = vmatpush.xpose.msra.mxu0 0.0
        %604 = vmatpush.xpose.msra.mxu0 0.0
        %605 = vmatpush.xpose.msra.mxu0 0.0
        %606 = vmatpush.xpose.msra.mxu0 %v582
        %607 = vmatmul.f32.gmra.mxu0 %v532
        %v608 = vpop.f32.mrf.mxu0
        %v609 = vadd.f32 0.0, %v608
        %610 = vdwg.mxu0
        %611 = vmatpush.xpose.msra.mxu0 0.0
        %612 = vmatpush.xpose.msra.mxu0 0.0
        %613 = vmatpush.xpose.msra.mxu0 0.0
        %614 = vmatpush.xpose.msra.mxu0 0.0
        %615 = vmatpush.xpose.msra.mxu0 0.0
        %616 = vmatpush.xpose.msra.mxu0 0.0
        %617 = vmatpush.xpose.msra.mxu0 0.0
        %618 = vmatpush.xpose.msra.mxu0 0.0
        %619 = vmatpush.xpose.msra.mxu0 0.0
        %620 = vmatpush.xpose.msra.mxu0 0.0
        %621 = vmatpush.xpose.msra.mxu0 0.0
        %622 = vmatpush.xpose.msra.mxu0 0.0
        %623 = vmatpush.xpose.msra.mxu0 0.0
        %624 = vmatpush.xpose.msra.mxu0 0.0
        %625 = vmatpush.xpose.msra.mxu0 0.0
        %626 = vmatpush.xpose.msra.mxu0 %v583
        %627 = vmatmul.f32.gmra.mxu0 %v533
        %v628 = vpop.f32.mrf.mxu0
        %v629 = vadd.f32 %v609, %v628
        %630 = vdwg.mxu0
        %631 = vmatpush.xpose.msra.mxu0 0.0
        %632 = vmatpush.xpose.msra.mxu0 0.0
        %633 = vmatpush.xpose.msra.mxu0 0.0
        %634 = vmatpush.xpose.msra.mxu0 0.0
        %635 = vmatpush.xpose.msra.mxu0 0.0
        %636 = vmatpush.xpose.msra.mxu0 0.0
        %637 = vmatpush.xpose.msra.mxu0 0.0
        %638 = vmatpush.xpose.msra.mxu0 0.0
        %639 = vmatpush.xpose.msra.mxu0 0.0
        %640 = vmatpush.xpose.msra.mxu0 0.0
        %641 = vmatpush.xpose.msra.mxu0 0.0
        %642 = vmatpush.xpose.msra.mxu0 0.0
        %643 = vmatpush.xpose.msra.mxu0 0.0
        %644 = vmatpush.xpose.msra.mxu0 0.0
        %645 = vmatpush.xpose.msra.mxu0 0.0
        %646 = vmatpush.xpose.msra.mxu0 %v584
        %647 = vmatmul.f32.gmra.mxu0 %v534
        %v648 = vpop.f32.mrf.mxu0
        %v649 = vadd.f32 %v629, %v648
        %650 = vdwg.mxu0
        %651 = vmatpush.xpose.msra.mxu0 0.0
        %652 = vmatpush.xpose.msra.mxu0 0.0
        %653 = vmatpush.xpose.msra.mxu0 0.0
        %654 = vmatpush.xpose.msra.mxu0 0.0
        %655 = vmatpush.xpose.msra.mxu0 0.0
        %656 = vmatpush.xpose.msra.mxu0 0.0
        %657 = vmatpush.xpose.msra.mxu0 0.0
        %658 = vmatpush.xpose.msra.mxu0 0.0
        %659 = vmatpush.xpose.msra.mxu0 0.0
        %660 = vmatpush.xpose.msra.mxu0 0.0
        %661 = vmatpush.xpose.msra.mxu0 0.0
        %662 = vmatpush.xpose.msra.mxu0 0.0
        %663 = vmatpush.xpose.msra.mxu0 0.0
        %664 = vmatpush.xpose.msra.mxu0 0.0
        %665 = vmatpush.xpose.msra.mxu0 0.0
        %666 = vmatpush.xpose.msra.mxu0 %v585
        %667 = vmatmul.f32.gmra.mxu0 %v535
        %v668 = vpop.f32.mrf.mxu0
        %v669 = vadd.f32 %v649, %v668
        %670 = vdwg.mxu0
        %671 = vmatpush.xpose.msra.mxu0 0.0
        %672 = vmatpush.xpose.msra.mxu0 0.0
        %673 = vmatpush.xpose.msra.mxu0 0.0
        %674 = vmatpush.xpose.msra.mxu0 0.0
        %675 = vmatpush.xpose.msra.mxu0 0.0
        %676 = vmatpush.xpose.msra.mxu0 0.0
        %677 = vmatpush.xpose.msra.mxu0 0.0
        %678 = vmatpush.xpose.msra.mxu0 0.0
        %679 = vmatpush.xpose.msra.mxu0 0.0
        %680 = vmatpush.xpose.msra.mxu0 0.0
        %681 = vmatpush.xpose.msra.mxu0 0.0
        %682 = vmatpush.xpose.msra.mxu0 0.0
        %683 = vmatpush.xpose.msra.mxu0 0.0
        %684 = vmatpush.xpose.msra.mxu0 0.0
        %685 = vmatpush.xpose.msra.mxu0 0.0
        %686 = vmatpush.xpose.msra.mxu0 %v586
        %687 = vmatmul.f32.gmra.mxu0 %v536
        %v688 = vpop.f32.mrf.mxu0
        %v689 = vadd.f32 %v669, %v688
        %690 = vdwg.mxu0
        %691 = vmatpush.xpose.msra.mxu0 0.0
        %692 = vmatpush.xpose.msra.mxu0 0.0
        %693 = vmatpush.xpose.msra.mxu0 0.0
        %694 = vmatpush.xpose.msra.mxu0 0.0
        %695 = vmatpush.xpose.msra.mxu0 0.0
        %696 = vmatpush.xpose.msra.mxu0 0.0
        %697 = vmatpush.xpose.msra.mxu0 0.0
        %698 = vmatpush.xpose.msra.mxu0 0.0
        %699 = vmatpush.xpose.msra.mxu0 0.0
        %700 = vmatpush.xpose.msra.mxu0 0.0
        %701 = vmatpush.xpose.msra.mxu0 0.0
        %702 = vmatpush.xpose.msra.mxu0 0.0
        %703 = vmatpush.xpose.msra.mxu0 0.0
        %704 = vmatpush.xpose.msra.mxu0 0.0
        %705 = vmatpush.xpose.msra.mxu0 0.0
        %706 = vmatpush.xpose.msra.mxu0 %v587
        %707 = vmatmul.f32.gmra.mxu0 %v537
        %v708 = vpop.f32.mrf.mxu0
        %v709 = vadd.f32 %v689, %v708
        %710 = vdwg.mxu0
        %711 = vmatpush.xpose.msra.mxu0 0.0
        %712 = vmatpush.xpose.msra.mxu0 0.0
        %713 = vmatpush.xpose.msra.mxu0 0.0
        %714 = vmatpush.xpose.msra.mxu0 0.0
        %715 = vmatpush.xpose.msra.mxu0 0.0
        %716 = vmatpush.xpose.msra.mxu0 0.0
        %717 = vmatpush.xpose.msra.mxu0 0.0
        %718 = vmatpush.xpose.msra.mxu0 0.0
        %719 = vmatpush.xpose.msra.mxu0 0.0
        %720 = vmatpush.xpose.msra.mxu0 0.0
        %721 = vmatpush.xpose.msra.mxu0 0.0
        %722 = vmatpush.xpose.msra.mxu0 0.0
        %723 = vmatpush.xpose.msra.mxu0 0.0
        %724 = vmatpush.xpose.msra.mxu0 0.0
        %725 = vmatpush.xpose.msra.mxu0 0.0
        %726 = vmatpush.xpose.msra.mxu0 %v588
        %727 = vmatmul.f32.gmra.mxu0 %v538
        %v728 = vpop.f32.mrf.mxu0
        %v729 = vadd.f32 %v709, %v728
        %730 = vdwg.mxu0
        %731 = vmatpush.xpose.msra.mxu0 0.0
        %732 = vmatpush.xpose.msra.mxu0 0.0
        %733 = vmatpush.xpose.msra.mxu0 0.0
        %734 = vmatpush.xpose.msra.mxu0 0.0
        %735 = vmatpush.xpose.msra.mxu0 0.0
        %736 = vmatpush.xpose.msra.mxu0 0.0
        %737 = vmatpush.xpose.msra.mxu0 0.0
        %738 = vmatpush.xpose.msra.mxu0 0.0
        %739 = vmatpush.xpose.msra.mxu0 0.0
        %740 = vmatpush.xpose.msra.mxu0 0.0
        %741 = vmatpush.xpose.msra.mxu0 0.0
        %742 = vmatpush.xpose.msra.mxu0 0.0
        %743 = vmatpush.xpose.msra.mxu0 0.0
        %744 = vmatpush.xpose.msra.mxu0 0.0
        %745 = vmatpush.xpose.msra.mxu0 0.0
        %746 = vmatpush.xpose.msra.mxu0 %v589
        %747 = vmatmul.f32.gmra.mxu0 %v539
        %v748 = vpop.f32.mrf.mxu0
        %v749 = vadd.f32 %v729, %v748
        %750 = vdwg.mxu0
        %v751 = vadd.f32 %v590, %v749
        %vm752 = vcmask 64512
        %753 = vst.msk [vmem:[%s152] sm:$0xff] %vm752, %v751
        %s754 = sand.u32 %s68, 1
        %s755 = scalar_lea.sflag [#allocation4], %s754
        %s756 = sand.u32 %s68, 1
        %s757 = smul.addr %s756, 8
        %s758 = scalar_lea.vmem [#allocation5], %s757
        // Predicated region
        $region33: #{tpu_custom_call.1} parent=23 // pred_check
          %p759 = pneg %p78
        $region34: #{tpu_custom_call.1} parent=23 // pred_check_branch
          %761 = sbr.rel (%p759) target = $region36
        $region35: #{tpu_custom_call.1} parent=23 // pred_region
          %763 = vsyncadd %s755, 0
          %s764 = smul.addr %s22, 8
          %s765 = scalar_lea.hbm %s1, %s764
          %s767 = sshll.u32 %s758, 4
          %s768 = int_to_ptr.vmem [resolvable:$true] %s767
          %s769 = sshll.u32 %s765, 4
          %s770 = int_to_ptr.hbm [resolvable:$true] %s769
          %772 = dma.vmem_to_hbm [thread:$0]  %s768, 128, %s770, %s755
        $region36: #{tpu_custom_call.1} parent=23 // pred_fallthru
          _
      $region24: #{tpu_custom_call.1} parent=5 // pred_fallthru
        _
      %p773 = scmp.le.s32.totalorder 2, %s13
      // Predicated region
      $region37: #{tpu_custom_call.1} parent=5 // pred_check
        %p774 = pneg %p773
      $region38: #{tpu_custom_call.1} parent=5 // pred_check_branch
        %776 = sbr.rel (%p774) target = $region40
      $region39: #{tpu_custom_call.1} parent=5 // pred_region
        %s777 = ssub.s32 %s13, 2
        // Predicated region
        $region41: #{tpu_custom_call.1} parent=39 // pred_check
          %p778 = pneg %p84
        $region42: #{tpu_custom_call.1} parent=39 // pred_check_branch
          %780 = sbr.rel (%p778) target = $region44
        $region43: #{tpu_custom_call.1} parent=39 // pred_region
          %s781 = sand.u32 %s69, 1
          %s782 = scalar_lea.sflag [#allocation4], %s781
          %s783 = sand.u32 %s69, 1
          %s784 = smul.addr %s783, 8
          %s785 = scalar_lea.vmem [#allocation5], %s784
          %787 = dma.done %s782, 128
        $region44: #{tpu_custom_call.1} parent=39 // pred_fallthru
          _
      $region40: #{tpu_custom_call.1} parent=5 // pred_fallthru
        _
    $region6: #{tpu_custom_call.1} parent=1 // loop_footer
      %s17 = sadd.s32 1, %s13
    $region7: #{tpu_custom_call.1} parent=1 // loop_footer_branch
      %12 = sbr.rel target = $region3
    $region8: #{tpu_custom_call.1} parent=1 // loop_exit
      _
    %788 = vsyncpa [#allocation3], 1
    %s789 = scalar_lea.sflag [#allocation3], 1
    %790 = vsyncpa %s789, 1
    %791 = vsyncpa [#allocation4], 1
    %s792 = scalar_lea.sflag [#allocation4], 1
    %793 = vsyncpa %s792, 1

</llo_original>
